<compile_context>
chip_gen: v5e
topology: v5e:2x2
jax: 0.10.0
libtpu: 0.0.40
codegen_flags: <defaults>
</compile_context>

<pallas_src>
import jax
import jax.numpy as jnp
from jax.experimental import pallas as pl
from jax.experimental.pallas import tpu as pltpu


def _conv1x1_bias_add_kernel(x_ref, other_ref, w_ref, b_ref, o_ref):
    # x_ref:     (1, Cin,  S) VMEM  zero-padded input for one batch, spatial on lanes
    # other_ref: (1, Cout, S) VMEM  tensor added after the conv (aliased with output)
    # w_ref:     (Cout, Cin)  VMEM  1x1 conv weight
    # b_ref:     (Cout, 1)    VMEM  conv bias
    # o_ref:     (1, Cout, S) VMEM
    cin = x_ref.shape[1]
    w = w_ref[...]                          # (Cout, Cin)
    x = x_ref[0]                            # (Cin, S)
    acc = other_ref[0] + b_ref[...]         # (Cout, S); bias broadcast along lanes
    for ci in range(cin):                   # Cin = 3: unrolled VPU FMAs, no MXU
        acc = acc + w[:, ci:ci + 1] * x[ci:ci + 1, :]
    o_ref[0] = acc.astype(o_ref.dtype)


def conv1x1_pad1_add(x_nchw, weight, bias, other_nchw):
    """x_nchw: (N, Cin, H, W); weight: (Cout, Cin, 1, 1); bias: (Cout,);
    other_nchw: (N, Cout, H+2, W+2).  Returns (N, Cout, H+2, W+2)."""
    N, Cin, H, W = x_nchw.shape
    Cout = weight.shape[0]
    Hp, Wp = H + 2, W + 2
    S = Hp * Wp

    # Only remaining glue: tiny zero-pad of x (padding=1).  Padded positions are
    # zero, so the kernel's conv term vanishes on the border automatically.
    x_pad = jnp.pad(x_nchw, ((0, 0), (0, 0), (1, 1), (1, 1)))

    # Contiguous reshapes (bitcast-level): flatten spatial onto the lane axis.
    x_flat = x_pad.reshape(N, Cin, S)
    other_flat = other_nchw.reshape(N, Cout, S)
    w2d = weight.reshape(Cout, Cin)
    b2d = bias.reshape(Cout, 1)

    out_flat = pl.pallas_call(
        _conv1x1_bias_add_kernel,
        out_shape=jax.ShapeDtypeStruct((N, Cout, S), x_nchw.dtype),
        grid_spec=pltpu.PrefetchScalarGridSpec(
            num_scalar_prefetch=0,
            grid=(N,),
            in_specs=[
                pl.BlockSpec((1, Cin, S), lambda n: (n, 0, 0)),
                pl.BlockSpec((1, Cout, S), lambda n: (n, 0, 0)),
                pl.BlockSpec((Cout, Cin), lambda n: (0, 0)),
                pl.BlockSpec((Cout, 1), lambda n: (0, 0)),
            ],
            out_specs=pl.BlockSpec((1, Cout, S), lambda n: (n, 0, 0)),
        ),
        # `other` (input index 1) aliases the output: conv result accumulates
        # into the existing buffer instead of allocating a new HBM stream.
        input_output_aliases={1: 0},
        compiler_params=pltpu.CompilerParams(
            dimension_semantics=("parallel",)),  # batch axis -> both TCs on v7x
    )(x_flat, other_flat, w2d, b2d)

    # Contiguous reshape back to NCHW (N, Cout, Hp, Wp).
    return out_flat.reshape(N, Cout, Hp, Wp)


def _reference(x_nchw, weight, bias, other_nchw):
    # Pure-JAX reference (1x1 conv with padding=1, then + bias, then + other).
    x_pad = jnp.pad(x_nchw, ((0, 0), (0, 0), (1, 1), (1, 1)))
    w2d = weight.reshape(weight.shape[0], weight.shape[1])
    v1 = jnp.einsum("nchw,oc->nohw", x_pad, w2d)
    v1 = v1 + bias[None, :, None, None]
    return v1 + other_nchw


if __name__ == "__main__":
    key = jax.random.PRNGKey(0)
    k_x, k_w, k_b, k_o = jax.random.split(key, 4)

    # Small shapes consistent with the module: N=2, Cin=3, H=W=16, Cout=8.
    N, Cin, H, W, Cout = 2, 3, 16, 16, 8
    x1 = jax.random.normal(k_x, (N, Cin, H, W), dtype=jnp.float32)
    weight = jax.random.normal(k_w, (Cout, Cin, 1, 1), dtype=jnp.float32) * 0.1
    bias = jax.random.normal(k_b, (Cout,), dtype=jnp.float32) * 0.1
    other = jax.random.normal(k_o, (N, Cout, H + 2, W + 2), dtype=jnp.float32)

    ref = _reference(x1, weight, bias, other)

    out = conv1x1_pad1_add(x1, weight, bias, other)
    out = jax.block_until_ready(out)

    assert out.shape == (N, Cout, H + 2, W + 2), out.shape
    assert jnp.allclose(out, ref, atol=1e-5, rtol=1e-5), float(jnp.max(jnp.abs(out - ref)))

    print("KERNEL_OK")
</pallas_src>

<mosaic_0001>
module attributes {stable_mosaic.version = 11 : i64} {
  func.func @_conv1x1_bias_add_kernel(%arg0: i32, %arg1: memref<1x3x324xf32, #tpu.memory_space<vmem>>, %arg2: memref<1x8x324xf32, #tpu.memory_space<vmem>>, %arg3: memref<8x3xf32, #tpu.memory_space<vmem>>, %arg4: memref<8x1xf32, #tpu.memory_space<vmem>>, %arg5: memref<1x8x324xf32, #tpu.memory_space<vmem>>) attributes {dimension_semantics = [#tpu.dimension_semantics<parallel>], iteration_bounds = array<i64: 2>, scalar_prefetch = 0 : i64, scratch_operands = 0 : i64, tpu.core_type = #tpu.core_type<tc>, window_params = [{transform_indices = @transform_0, window_bounds = array<i64: 1, 3, 324>}, {transform_indices = @transform_1, window_bounds = array<i64: 1, 8, 324>}, {pipeline_mode = #tpu.pipeline_mode<synchronous>, transform_indices = @transform_2, window_bounds = array<i64: 8, 3>}, {pipeline_mode = #tpu.pipeline_mode<synchronous>, transform_indices = @transform_3, window_bounds = array<i64: 8, 1>}, {transform_indices = @transform_4, window_bounds = array<i64: 1, 8, 324>}]} {
    %c0 = arith.constant 0 : index
    %c0_0 = arith.constant 0 : index
    %0 = vector.load %arg3[%c0, %c0_0] : memref<8x3xf32, #tpu.memory_space<vmem>>, vector<8x3xf32>
    %c0_1 = arith.constant 0 : index
    %c0_2 = arith.constant 0 : index
    %c0_3 = arith.constant 0 : index
    %1 = vector.load %arg1[%c0_1, %c0_2, %c0_3] : memref<1x3x324xf32, #tpu.memory_space<vmem>>, vector<1x3x324xf32>
    %2 = vector.shape_cast %1 : vector<1x3x324xf32> to vector<3x324xf32>
    %c0_4 = arith.constant 0 : index
    %c0_5 = arith.constant 0 : index
    %c0_6 = arith.constant 0 : index
    %3 = vector.load %arg2[%c0_4, %c0_5, %c0_6] : memref<1x8x324xf32, #tpu.memory_space<vmem>>, vector<1x8x324xf32>
    %4 = vector.shape_cast %3 : vector<1x8x324xf32> to vector<8x324xf32>
    %c0_7 = arith.constant 0 : index
    %c0_8 = arith.constant 0 : index
    %5 = vector.load %arg4[%c0_7, %c0_8] : memref<8x1xf32, #tpu.memory_space<vmem>>, vector<8x1xf32>
    %6 = vector.broadcast %5 : vector<8x1xf32> to vector<8x324xf32>
    %7 = arith.addf %4, %6 : vector<8x324xf32>
    %8 = vector.extract_strided_slice %0 {offsets = [0, 0], sizes = [8, 1], strides = [1, 1]} : vector<8x3xf32> to vector<8x1xf32>
    %9 = vector.extract_strided_slice %2 {offsets = [0, 0], sizes = [1, 324], strides = [1, 1]} : vector<3x324xf32> to vector<1x324xf32>
    %10 = vector.broadcast %8 : vector<8x1xf32> to vector<8x324xf32>
    %11 = vector.broadcast %9 : vector<1x324xf32> to vector<8x324xf32>
    %12 = arith.mulf %10, %11 : vector<8x324xf32>
    %13 = arith.addf %7, %12 : vector<8x324xf32>
    %14 = vector.extract_strided_slice %0 {offsets = [0, 1], sizes = [8, 1], strides = [1, 1]} : vector<8x3xf32> to vector<8x1xf32>
    %15 = vector.extract_strided_slice %2 {offsets = [1, 0], sizes = [1, 324], strides = [1, 1]} : vector<3x324xf32> to vector<1x324xf32>
    %16 = vector.broadcast %14 : vector<8x1xf32> to vector<8x324xf32>
    %17 = vector.broadcast %15 : vector<1x324xf32> to vector<8x324xf32>
    %18 = arith.mulf %16, %17 : vector<8x324xf32>
    %19 = arith.addf %13, %18 : vector<8x324xf32>
    %20 = vector.extract_strided_slice %0 {offsets = [0, 2], sizes = [8, 1], strides = [1, 1]} : vector<8x3xf32> to vector<8x1xf32>
    %21 = vector.extract_strided_slice %2 {offsets = [2, 0], sizes = [1, 324], strides = [1, 1]} : vector<3x324xf32> to vector<1x324xf32>
    %22 = vector.broadcast %20 : vector<8x1xf32> to vector<8x324xf32>
    %23 = vector.broadcast %21 : vector<1x324xf32> to vector<8x324xf32>
    %24 = arith.mulf %22, %23 : vector<8x324xf32>
    %25 = arith.addf %19, %24 : vector<8x324xf32>
    %c0_9 = arith.constant 0 : index
    %c0_10 = arith.constant 0 : index
    %c0_11 = arith.constant 0 : index
    %26 = vector.load %arg5[%c0_9, %c0_10, %c0_11] : memref<1x8x324xf32, #tpu.memory_space<vmem>>, vector<1x8x324xf32>
    %27 = vector.shape_cast %26 : vector<1x8x324xf32> to vector<8x324xf32>
    %28 = vector.shape_cast %25 : vector<8x324xf32> to vector<1x8x324xf32>
    tpu.vector_store %arg5[%c0_9, %c0_10, %c0_11], %28 {strides = array<i32>} : memref<1x8x324xf32, #tpu.memory_space<vmem>>, vector<1x8x324xf32>,
    return
  }
  func.func @transform_0(%arg0: i32) -> (i32, i32, i32) {
    %c0_i32 = arith.constant 0 : i32
    %c0_i32_0 = arith.constant 0 : i32
    %c0_i32_1 = arith.constant 0 : i32
    return %arg0, %c0_i32, %c0_i32_0 : i32, i32, i32
  }
  func.func @transform_1(%arg0: i32) -> (i32, i32, i32) {
    %c0_i32 = arith.constant 0 : i32
    %c0_i32_0 = arith.constant 0 : i32
    %c0_i32_1 = arith.constant 0 : i32
    return %arg0, %c0_i32, %c0_i32_0 : i32, i32, i32
  }
  func.func @transform_2(%arg0: i32) -> (i32, i32) {
    %c0_i32 = arith.constant 0 : i32
    %c0_i32_0 = arith.constant 0 : i32
    %c0_i32_1 = arith.constant 0 : i32
    return %c0_i32, %c0_i32_0 : i32, i32
  }
  func.func @transform_3(%arg0: i32) -> (i32, i32) {
    %c0_i32 = arith.constant 0 : i32
    %c0_i32_0 = arith.constant 0 : i32
    %c0_i32_1 = arith.constant 0 : i32
    return %c0_i32, %c0_i32_0 : i32, i32
  }
  func.func @transform_4(%arg0: i32) -> (i32, i32, i32) {
    %c0_i32 = arith.constant 0 : i32
    %c0_i32_0 = arith.constant 0 : i32
    %c0_i32_1 = arith.constant 0 : i32
    return %arg0, %c0_i32, %c0_i32_0 : i32, i32, i32
  }
}

</mosaic_0001>

<llo_original>
// kernel: tpu_custom_call.1
$region0: #{tpu_custom_call.1}
  #allocation0 [shape = 'u32[]', space=smem, size = 0x4, offset = 0x4, fixed_abs, tag = 'smem constant byte address 0x4 - core index']
  #allocation1 [shape = 'u32[72,128]{1,0:T(1,128)}', space=vmem, size = 0x9000, scoped, tag = 'internal scratch']
  %s0 = inlined_call_operand.vmem [shape: f32[2,3,324], index: 0, kind: input, shape index: {}]
  %s1 = inlined_call_operand.hbm [shape: f32[2,8,324], index: 1, kind: input, shape index: {}, may-alias: {1,4}]
  %s2 = inlined_call_operand.vmem [shape: f32[8,3], index: 2, kind: input, shape index: {}]
  %s3 = inlined_call_operand.vmem [shape: f32[8,1], index: 3, kind: input, shape index: {}]
  %s4 = inlined_call_operand.hbm [shape: f32[2,8,324], index: 4, kind: output, shape index: {}, may-alias: {1,4}]
  %s5 = sld [smem:[#allocation0]]
  $region53: #{tpu_custom_call.1} parent=0
    _
  %s7 = ssub.s32 1, %s5
  %s8 = scalar_select 0, %s7, %s5
  $region1: #{tpu_custom_call.1} parent=0
    #allocation2 [shape = 'u8[24576]{0}', space=vmem, size = 0x6000, scoped, tag = 'input window, operand 1']
    #allocation3 [shape = 's32[2]{0}', space=sflag, size = 0x8, scoped, tag = 'scoped memory for tpu_custom_call.1']
    #allocation4 [shape = 's32[2]{0}', space=sflag, size = 0x8, scoped, tag = 'scoped memory for tpu_custom_call.1']
    #allocation5 [shape = 'u8[24576]{0}', space=vmem, size = 0x6000, scoped, tag = 'output window, operand 0']
    %9 = vsyncpa [#allocation3], 0
    %s10 = scalar_lea.sflag [#allocation3], 1
    %11 = vsyncpa %s10, 0
    %12 = vsyncpa [#allocation4], 0
    %s13 = scalar_lea.sflag [#allocation4], 1
    %14 = vsyncpa %s13, 0
    loop: start=0, step=1, limit=4
    $region2: #{tpu_custom_call.1} parent=1 // loop_pre_header
      _
    $region3: #{tpu_custom_call.1} parent=1 // loop_header
      %s16 = sphi 0, %s20
      %p17 = scmp.ge.s32.totalorder %s16, 4
      %s26 = sphi 0, %s28
      %s29 = sphi 0, %s26
      %s30 = sphi 0, %s29
      %s46 = sphi 0, %s30
      %s52 = sphi 0, %s54
      %s55 = sphi 0, %s52
      %s56 = sphi 0, %s55
      %s72 = sphi 0, %s56
      %s76 = sphi 0, %s76
      %s78 = sphi 0, %s76
      %s79 = sphi 0, %s78
      %s93 = sphi 0, %s79
      %s97 = sphi 0, %s97
      %s99 = sphi 0, %s97
      %s100 = sphi 0, %s99
      %s114 = sphi 0, %s100
      %s120 = sphi 0, %s122
      %s123 = sphi 0, %s120
      %s124 = sphi 0, %s123
      %s140 = sphi 0, %s124
    $region4: #{tpu_custom_call.1} parent=1 // loop_header_branch
      %19 = sbr.rel (%p17) target = $region8
    $region5: #{tpu_custom_call.1} parent=1 // loop_body
      %s21 = ssub.s32 %s16, 1
      %s22 = ssub.s32 %s16, 2
      %s23 = sadd.s32 %s16, 1
      %s24 = ssub.s32 %s16, %s23
      %p25 = scmp.eq.s32.totalorder %s24, 0
      %s27 = sadd.s32 %s26, 1
      %s28 = scalar_select %p25, %s26, %s27
      %p31 = pneg %p25
      %p32 = scmp.eq.s32.totalorder %s16, 1
      %p33 = por %p31, %p32
      %p34 = scmp.ne.s32.totalorder %s26, %s29
      %p35 = scmp.eq.s32.totalorder %s16, 0
      %p36 = por %p34, %p35
      %p37 = scmp.ne.s32.totalorder %s26, %s29
      %p38 = scmp.eq.s32.totalorder %s21, 1
      %p39 = por %p37, %p38
      %p40 = scmp.ne.s32.totalorder %s29, %s30
      %p41 = scmp.eq.s32.totalorder %s21, 0
      %p42 = por %p40, %p41
      %p43 = scmp.ne.s32.totalorder %s29, %s30
      %p44 = scmp.eq.s32.totalorder %s22, 1
      %p45 = por %p43, %p44
      %p47 = scmp.ne.s32.totalorder %s30, %s46
      %p48 = scmp.eq.s32.totalorder %s22, 0
      %p49 = por %p47, %p48
      %s50 = ssub.s32 %s16, %s23
      %p51 = scmp.eq.s32.totalorder %s50, 0
      %s53 = sadd.s32 %s52, 1
      %s54 = scalar_select %p51, %s52, %s53
      %p57 = pneg %p51
      %p58 = scmp.eq.s32.totalorder %s16, 1
      %p59 = por %p57, %p58
      %p60 = scmp.ne.s32.totalorder %s52, %s55
      %p61 = scmp.eq.s32.totalorder %s16, 0
      %p62 = por %p60, %p61
      %p63 = scmp.ne.s32.totalorder %s52, %s55
      %p64 = scmp.eq.s32.totalorder %s21, 1
      %p65 = por %p63, %p64
      %p66 = scmp.ne.s32.totalorder %s55, %s56
      %p67 = scmp.eq.s32.totalorder %s21, 0
      %p68 = por %p66, %p67
      %p69 = scmp.ne.s32.totalorder %s55, %s56
      %p70 = scmp.eq.s32.totalorder %s22, 1
      %p71 = por %p69, %p70
      %p73 = scmp.ne.s32.totalorder %s56, %s72
      %p74 = scmp.eq.s32.totalorder %s22, 0
      %p75 = por %p73, %p74
      %s77 = sadd.s32 %s76, 1
      %p80 = scmp.eq.s32.totalorder %s16, 1
      %p81 = scmp.ne.s32.totalorder %s76, %s78
      %p82 = scmp.eq.s32.totalorder %s16, 0
      %p83 = por %p81, %p82
      %p84 = scmp.ne.s32.totalorder %s76, %s78
      %p85 = scmp.eq.s32.totalorder %s21, 1
      %p86 = por %p84, %p85
      %p87 = scmp.ne.s32.totalorder %s78, %s79
      %p88 = scmp.eq.s32.totalorder %s21, 0
      %p89 = por %p87, %p88
      %p90 = scmp.ne.s32.totalorder %s78, %s79
      %p91 = scmp.eq.s32.totalorder %s22, 1
      %p92 = por %p90, %p91
      %p94 = scmp.ne.s32.totalorder %s79, %s93
      %p95 = scmp.eq.s32.totalorder %s22, 0
      %p96 = por %p94, %p95
      %s98 = sadd.s32 %s97, 1
      %p101 = scmp.eq.s32.totalorder %s16, 1
      %p102 = scmp.ne.s32.totalorder %s97, %s99
      %p103 = scmp.eq.s32.totalorder %s16, 0
      %p104 = por %p102, %p103
      %p105 = scmp.ne.s32.totalorder %s97, %s99
      %p106 = scmp.eq.s32.totalorder %s21, 1
      %p107 = por %p105, %p106
      %p108 = scmp.ne.s32.totalorder %s99, %s100
      %p109 = scmp.eq.s32.totalorder %s21, 0
      %p110 = por %p108, %p109
      %p111 = scmp.ne.s32.totalorder %s99, %s100
      %p112 = scmp.eq.s32.totalorder %s22, 1
      %p113 = por %p111, %p112
      %p115 = scmp.ne.s32.totalorder %s100, %s114
      %p116 = scmp.eq.s32.totalorder %s22, 0
      %p117 = por %p115, %p116
      %s118 = ssub.s32 %s16, %s23
      %p119 = scmp.eq.s32.totalorder %s118, 0
      %s121 = sadd.s32 %s120, 1
      %s122 = scalar_select %p119, %s120, %s121
      %p125 = pneg %p119
      %p126 = scmp.eq.s32.totalorder %s16, 1
      %p127 = por %p125, %p126
      %p128 = scmp.ne.s32.totalorder %s120, %s123
      %p129 = scmp.eq.s32.totalorder %s16, 0
      %p130 = por %p128, %p129
      %p131 = scmp.ne.s32.totalorder %s120, %s123
      %p132 = scmp.eq.s32.totalorder %s21, 1
      %p133 = por %p131, %p132
      %p134 = scmp.ne.s32.totalorder %s123, %s124
      %p135 = scmp.eq.s32.totalorder %s21, 0
      %p136 = por %p134, %p135
      %p137 = scmp.ne.s32.totalorder %s123, %s124
      %p138 = scmp.eq.s32.totalorder %s22, 1
      %p139 = por %p137, %p138
      %p141 = scmp.ne.s32.totalorder %s124, %s140
      %p142 = scmp.eq.s32.totalorder %s22, 0
      %p143 = por %p141, %p142
      %p144 = scmp.le.s32.totalorder 1, %s16
      %p145 = scmp.lt.s32.totalorder %s16, 3
      %p146 = pnand %p144, %p145
      %p147 = pneg %p146
      // Predicated region
      $region9: #{tpu_custom_call.1} parent=5 // pred_check
        _
      $region10: #{tpu_custom_call.1} parent=5 // pred_check_branch
        %149 = sbr.rel (%p146) target = $region12
      $region11: #{tpu_custom_call.1} parent=5 // pred_region
        %s150 = ssub.s32 %s16, 1
        // Predicated region
        $region13: #{tpu_custom_call.1} parent=11 // pred_check
          %p151 = pneg %p89
        $region14: #{tpu_custom_call.1} parent=11 // pred_check_branch
          %153 = sbr.rel (%p151) target = $region16
        $region15: #{tpu_custom_call.1} parent=11 // pred_region
          _
        $region16: #{tpu_custom_call.1} parent=11 // pred_fallthru
          _
        // Predicated region
        $region17: #{tpu_custom_call.1} parent=11 // pred_check
          %p154 = pneg %p110
        $region18: #{tpu_custom_call.1} parent=11 // pred_check_branch
          %156 = sbr.rel (%p154) target = $region20
        $region19: #{tpu_custom_call.1} parent=11 // pred_region
          _
        $region20: #{tpu_custom_call.1} parent=11 // pred_fallthru
          _
      $region12: #{tpu_custom_call.1} parent=5 // pred_fallthru
        _
      %p157 = scmp.lt.s32.totalorder %s16, 2
      // Predicated region
      $region21: #{tpu_custom_call.1} parent=5 // pred_check
        %p158 = pneg %p157
      $region22: #{tpu_custom_call.1} parent=5 // pred_check_branch
        %160 = sbr.rel (%p158) target = $region24
      $region23: #{tpu_custom_call.1} parent=5 // pred_region
        // Predicated region
        $region25: #{tpu_custom_call.1} parent=23 // pred_check
          %p161 = pneg %p36
        $region26: #{tpu_custom_call.1} parent=23 // pred_check_branch
          %163 = sbr.rel (%p161) target = $region28
        $region27: #{tpu_custom_call.1} parent=23 // pred_region
          %p164 = scmp.lt.s32.totalorder %s16, 1
          %s165 = scalar_select %p164, %s16, 1
          %s166 = smul.addr %s165, 3
          %s167 = smul.addr %s166, 4
          %s168 = scalar_lea.vmem %s0, %s167
        $region28: #{tpu_custom_call.1} parent=23 // pred_fallthru
          _
        // Predicated region
        $region29: #{tpu_custom_call.1} parent=23 // pred_check
          %p169 = pneg %p62
        $region30: #{tpu_custom_call.1} parent=23 // pred_check_branch
          %171 = sbr.rel (%p169) target = $region32
        $region31: #{tpu_custom_call.1} parent=23 // pred_region
          %s172 = sand.u32 %s52, 1
          %s173 = scalar_lea.sflag [#allocation3], %s172
          %s174 = sand.u32 %s52, 1
          %s175 = smul.addr %s174, 24
          %s176 = scalar_lea.vmem [#allocation2], %s175
          %178 = vsyncadd %s173, 0
          %s179 = smul.addr %s16, 3
          %s180 = smul.addr %s179, 8
          %s181 = scalar_lea.hbm %s1, %s180
          %s183 = sshll.u32 %s181, 4
          %s184 = int_to_ptr.hbm [resolvable:$true] %s183
          %s185 = sshll.u32 %s176, 4
          %s186 = int_to_ptr.vmem [resolvable:$true] %s185
          %188 = dma.hbm_to_vmem [thread:$0]  %s184, 384, %s186, %s173
        $region32: #{tpu_custom_call.1} parent=23 // pred_fallthru
          _
      $region24: #{tpu_custom_call.1} parent=5 // pred_fallthru
        _
      %p189 = scmp.le.s32.totalorder 1, %s16
      %p190 = scmp.lt.s32.totalorder %s16, 3
      %p191 = pnand %p189, %p190
      %p192 = pneg %p191
      // Predicated region
      $region33: #{tpu_custom_call.1} parent=5 // pred_check
        _
      $region34: #{tpu_custom_call.1} parent=5 // pred_check_branch
        %194 = sbr.rel (%p191) target = $region36
      $region35: #{tpu_custom_call.1} parent=5 // pred_region
        %s195 = ssub.s32 %s16, 1
        %s196 = sand.u32 %s55, 1
        %s197 = scalar_lea.sflag [#allocation3], %s196
        %s198 = sand.u32 %s55, 1
        %s199 = smul.addr %s198, 24
        %s200 = scalar_lea.vmem [#allocation2], %s199
        // Predicated region
        $region37: #{tpu_custom_call.1} parent=35 // pred_check
          %p201 = pneg %p68
        $region38: #{tpu_custom_call.1} parent=35 // pred_check_branch
          %203 = sbr.rel (%p201) target = $region40
        $region39: #{tpu_custom_call.1} parent=35 // pred_region
          %205 = dma.done %s197, 384
        $region40: #{tpu_custom_call.1} parent=35 // pred_fallthru
          _
        %p206 = scmp.lt.s32.totalorder %s21, 1
        %s207 = scalar_select %p206, %s21, 1
        %s208 = smul.addr %s207, 3
        %s209 = smul.addr %s208, 4
        %s210 = scalar_lea.vmem %s0, %s209
        %p211 = pneg %p42
        %p212 = pneg %p39
        %s213 = sand.u32 %s55, 1
        %s214 = scalar_lea.sflag [#allocation3], %s213
        %s215 = sand.u32 %s55, 1
        %s216 = smul.addr %s215, 24
        %s217 = scalar_lea.vmem [#allocation2], %s216
        %p218 = pneg %p68
        %p219 = pneg %p65
        %p220 = pneg %p89
        %p221 = pneg %p86
        %p222 = pneg %p110
        %p223 = pneg %p107
        %p224 = pneg %p136
        %p225 = pneg %p133
        %s226 = sand.u32 %s123, 1
        %s227 = scalar_lea.sflag [#allocation4], %s226
        %s228 = sand.u32 %s123, 1
        %s229 = smul.addr %s228, 24
        %s230 = scalar_lea.vmem [#allocation5], %s229
        %p231 = scmp.lt.s32.totalorder %s21, 1
        %s232 = scalar_select %p231, %s21, 1
        %s233 = smul.addr %s232, 3
        %s234 = smul.addr %s233, 4
        %s235 = scalar_lea.vmem %s0, %s234
        %v236 = vld [vmem:[%s2] sm:$0xff]
        %v237 = vld [vmem:[%s235] sm:$0x77]
        %v238 = vld [vmem:[%s235 + $0x8] sm:$0x7]
        %v239 = vld [vmem:[%s200] sm:$0xff]
        %v240 = vld [vmem:[%s200 + $0x8] sm:$0xff]
        %v241 = vld [vmem:[%s200 + $0x10] sm:$0xff]
        %v242 = vld [vmem:[%s3] sm:$0xff]
        %244 = vset.pattern.permute.xlu0 0
        %245 = vperm.xlu0 %244, %v242
        %v246 = vpop.permute.xlu0 %245
        %v248 = vadd.f32 %v239, %v246
        %v249 = vadd.f32 %v240, %v246
        %v250 = vadd.f32 %v241, %v246
        %252 = vset.pattern.permute.xlu0 0
        %253 = vperm.xlu0 %252, %v236
        %v254 = vpop.permute.xlu0 %253
        %v258 = vperm.slane %v237, 0
        %v259 = vperm.slane %v237, 4
        %v260 = vperm.slane %v238, 0
        %v264 = vperm.slane %v258, 0
        %v265 = vperm.slane %v259, 0
        %v266 = vperm.slane %v260, 0
        %v267 = vmul.f32 %v254, %v264
        %v268 = vmul.f32 %v254, %v265
        %v269 = vmul.f32 %v254, %v266
        %v270 = vadd.f32 %v248, %v267
        %v271 = vadd.f32 %v249, %v268
        %v272 = vadd.f32 %v250, %v269
        %273 = vset.pattern.permute.xlu0 1
        %274 = vperm.xlu0 %273, %v236
        %v275 = vpop.permute.xlu0 %274
        %v277 = vperm.slane %v237, 1
        %v278 = vperm.slane %v237, 5
        %v279 = vperm.slane %v238, 1
        %v283 = vperm.slane %v277, 1
        %v284 = vperm.slane %v278, 1
        %v285 = vperm.slane %v279, 1
        %v286 = vmul.f32 %v275, %v283
        %v287 = vmul.f32 %v275, %v284
        %v288 = vmul.f32 %v275, %v285
        %v289 = vadd.f32 %v270, %v286
        %v290 = vadd.f32 %v271, %v287
        %v291 = vadd.f32 %v272, %v288
        %292 = vset.pattern.permute.xlu0 2
        %293 = vperm.xlu0 %292, %v236
        %v294 = vpop.permute.xlu0 %293
        %v296 = vperm.slane %v237, 2
        %v297 = vperm.slane %v237, 6
        %v298 = vperm.slane %v238, 2
        %v302 = vperm.slane %v296, 2
        %v303 = vperm.slane %v297, 2
        %v304 = vperm.slane %v298, 2
        %v305 = vmul.f32 %v294, %v302
        %v306 = vmul.f32 %v294, %v303
        %v307 = vmul.f32 %v294, %v304
        %v308 = vadd.f32 %v289, %v305
        %v309 = vadd.f32 %v290, %v306
        %v310 = vadd.f32 %v291, %v307
        %311 = vst [vmem:[%s230] sm:$0xff] %v308
        %312 = vst [vmem:[%s230 + $0x8] sm:$0xff] %v309
        %vm313 = vcmask 556032
        %314 = vst.msk [vmem:[%s230 + $0x10] sm:$0xff] %vm313, %v310
        %s315 = sand.u32 %s123, 1
        %s316 = scalar_lea.sflag [#allocation4], %s315
        %s317 = sand.u32 %s123, 1
        %s318 = smul.addr %s317, 24
        %s319 = scalar_lea.vmem [#allocation5], %s318
        // Predicated region
        $region41: #{tpu_custom_call.1} parent=35 // pred_check
          %p320 = pneg %p133
        $region42: #{tpu_custom_call.1} parent=35 // pred_check_branch
          %322 = sbr.rel (%p320) target = $region44
        $region43: #{tpu_custom_call.1} parent=35 // pred_region
          %324 = vsyncadd %s316, 0
          %s325 = smul.addr %s21, 3
          %s326 = smul.addr %s325, 8
          %s327 = scalar_lea.hbm %s4, %s326
          %s329 = sshll.u32 %s319, 4
          %s330 = int_to_ptr.vmem [resolvable:$true] %s329
          %s331 = sshll.u32 %s327, 4
          %s332 = int_to_ptr.hbm [resolvable:$true] %s331
          %334 = dma.vmem_to_hbm [thread:$0]  %s330, 384, %s332, %s316
        $region44: #{tpu_custom_call.1} parent=35 // pred_fallthru
          _
      $region36: #{tpu_custom_call.1} parent=5 // pred_fallthru
        _
      %p335 = scmp.le.s32.totalorder 2, %s16
      // Predicated region
      $region45: #{tpu_custom_call.1} parent=5 // pred_check
        %p336 = pneg %p335
      $region46: #{tpu_custom_call.1} parent=5 // pred_check_branch
        %338 = sbr.rel (%p336) target = $region48
      $region47: #{tpu_custom_call.1} parent=5 // pred_region
        %s339 = ssub.s32 %s16, 2
        // Predicated region
        $region49: #{tpu_custom_call.1} parent=47 // pred_check
          %p340 = pneg %p139
        $region50: #{tpu_custom_call.1} parent=47 // pred_check_branch
          %342 = sbr.rel (%p340) target = $region52
        $region51: #{tpu_custom_call.1} parent=47 // pred_region
          %s343 = sand.u32 %s124, 1
          %s344 = scalar_lea.sflag [#allocation4], %s343
          %s345 = sand.u32 %s124, 1
          %s346 = smul.addr %s345, 24
          %s347 = scalar_lea.vmem [#allocation5], %s346
          %349 = dma.done %s344, 384
        $region52: #{tpu_custom_call.1} parent=47 // pred_fallthru
          _
      $region48: #{tpu_custom_call.1} parent=5 // pred_fallthru
        _
    $region6: #{tpu_custom_call.1} parent=1 // loop_footer
      %s20 = sadd.s32 1, %s16
    $region7: #{tpu_custom_call.1} parent=1 // loop_footer_branch
      %15 = sbr.rel target = $region3
    $region8: #{tpu_custom_call.1} parent=1 // loop_exit
      _
    %350 = vsyncpa [#allocation3], 1
    %s351 = scalar_lea.sflag [#allocation3], 1
    %352 = vsyncpa %s351, 1
    %353 = vsyncpa [#allocation4], 1
    %s354 = scalar_lea.sflag [#allocation4], 1
    %355 = vsyncpa %s354, 1

</llo_original>
